<compile_context>
chip_gen: v7x
topology: tpu7x:2x2x1
jax: 0.10.0
libtpu: 0.0.40
codegen_flags: <defaults>
</compile_context>

<pallas_src>
import math

import jax
import jax.numpy as jnp
from jax.experimental import pallas as pl
from jax.experimental.pallas import tpu as pltpu

_LANE = 128
_SUBLANE = 8


def _round_up(x, m):
    return -(-x // m) * m


def _lane_bytes(ncols, itemsize):
    # VMEM rows are padded to 128 lanes regardless of the logical minor dim.
    return _round_up(max(int(ncols), 1), _LANE) * int(itemsize)


def _time_encoder_kernel(t_ref, lat_ref, wper_ref, wpha_ref, shift_ref, out_ref):
    # lat: [tm, D] (matmul dtype), wper/wpha: [D, 2F] (matmul dtype, gains folded),
    # t: [tm, 1] f32, shift: [1, 2F] f32 ([0.. | pi/2..]), out: [tm, 2F].
    lat = lat_ref[...]
    periods = jnp.dot(lat, wper_ref[...], preferred_element_type=jnp.float32)
    phases = jnp.dot(lat, wpha_ref[...], preferred_element_type=jnp.float32)
    # First F lanes -> sin(raw); last F lanes -> sin(raw + pi/2) == cos(raw).
    raw = periods * t_ref[...] + phases + shift_ref[...]
    out_ref[...] = jnp.sin(raw).astype(out_ref.dtype)


def predictable_time_encoder(t, latent, weight, *, max_period_len,
                             matmul_dtype=jnp.bfloat16,
                             out_dtype=jnp.float32,
                             tile_m=None):
    """Pallas forward of PredictableTimeEncoder.

    t:      [B, N]  (row-major flatten of t must match the row order of latent)
    latent: [B*N, latent_dim]
    weight: [2*num_feats, latent_dim]  (PyTorch FullyConnectedLayer layout, bias=False)
    """
    assert t.ndim == 2, f"Wrong shape: {t.shape}"
    M, D = latent.shape
    assert t.size == M, f"Wrong shape: {t.shape}, {latent.shape}"
    two_f = weight.shape[0]
    assert two_f % 2 == 0, f"weight.shape[0] must be even, got {two_f}"
    F_ = two_f // 2

    weight_gain = 1.0 / math.sqrt(D)
    inv_max_period = 1.0 / float(max_period_len)

    # Fold weight_gain and 1/max_period_len into the weights, then duplicate
    # them horizontally so the kernel emits a single lane-dense sin() pass.
    w_t = jnp.transpose(weight).astype(jnp.float32)                     # [D, 2F]
    w_per = w_t[:, :F_] * (weight_gain * inv_max_period)                # [D, F]
    w_pha = w_t[:, F_:] * weight_gain                                   # [D, F]
    w_per2 = jnp.concatenate([w_per, w_per], axis=1).astype(matmul_dtype)   # [D, 2F]
    w_pha2 = jnp.concatenate([w_pha, w_pha], axis=1).astype(matmul_dtype)   # [D, 2F]
    shift = jnp.concatenate(
        [jnp.zeros((1, F_), jnp.float32),
         jnp.full((1, F_), jnp.pi / 2, jnp.float32)], axis=1)               # [1, 2F]

    t_flat = t.reshape(-1, 1).astype(jnp.float32)                       # [M, 1]
    lat = latent.astype(matmul_dtype)        # no-op if caller already passes matmul_dtype

    lat_isz = jnp.dtype(matmul_dtype).itemsize
    out_isz = jnp.dtype(out_dtype).itemsize

    # ---- Tile sizing (lane-padding-aware VMEM estimate) ---------------------
    if tile_m is None:
        row_pipelined = 2 * (_lane_bytes(1, 4)             # t  (double-buffered)
                             + _lane_bytes(D, lat_isz)     # latent
                             + _lane_bytes(two_f, out_isz))  # output
        row_scratch = 3 * _lane_bytes(two_f, 4)            # periods/phases/raw (f32)
        budget = 40 * 1024 * 1024                          # headroom under 48 MiB limit
        tile_m = budget // (row_pipelined + row_scratch)
        tile_m = max(_SUBLANE, min(8192, (tile_m // _SUBLANE) * _SUBLANE))
        # Keep >= ~4 grid steps so the "parallel" axis can split across both
        # v7x TensorCores and the pipeline has DMA/compute to overlap.
        tile_m = min(tile_m, max(_SUBLANE, _round_up(pl.cdiv(M, 4), _SUBLANE)))
    else:
        tile_m = max(_SUBLANE, _round_up(int(tile_m), _SUBLANE))

    grid_m = pl.cdiv(M, tile_m)   # partial final block handled by Pallas (no jnp.pad)

    cost = pl.CostEstimate(
        flops=4 * M * D * two_f,                     # two [M,D]x[D,2F] matmuls
        transcendentals=M * two_f,                   # one sin per output element
        bytes_accessed=(M * 4 + M * D * lat_isz + M * two_f * out_isz
                        + 2 * D * two_f * lat_isz + two_f * 4),
    )

    out = pl.pallas_call(
        _time_encoder_kernel,
        out_shape=jax.ShapeDtypeStruct((M, two_f), out_dtype),
        grid=(grid_m,),
        in_specs=[
            pl.BlockSpec((tile_m, 1), lambda i: (i, 0)),     # t
            pl.BlockSpec((tile_m, D), lambda i: (i, 0)),     # latent
            pl.BlockSpec((D, two_f), lambda i: (0, 0)),      # w_per2 (VMEM resident)
            pl.BlockSpec((D, two_f), lambda i: (0, 0)),      # w_pha2 (VMEM resident)
            pl.BlockSpec((1, two_f), lambda i: (0, 0)),      # [0 | pi/2] shift (resident)
        ],
        out_specs=pl.BlockSpec((tile_m, two_f), lambda i: (i, 0)),
        compiler_params=pltpu.CompilerParams(
            dimension_semantics=("parallel",),
            vmem_limit_bytes=48 * 1024 * 1024,
        ),
        cost_estimate=cost,
    )(t_flat, lat, w_per2, w_pha2, shift)

    return out


def _reference(t, latent, weight, *, max_period_len):
    D = latent.shape[1]
    F_ = weight.shape[0] // 2
    gain = 1.0 / math.sqrt(D)
    wave = jnp.matmul(latent.astype(jnp.float32),
                      (weight.astype(jnp.float32) * gain).T,
                      precision=jax.lax.Precision.HIGHEST)
    periods, phases = wave[:, :F_], wave[:, F_:]
    tt = t.reshape(-1).astype(jnp.float32)
    raw = periods * tt[:, None] / max_period_len + phases
    return jnp.concatenate([jnp.sin(raw), jnp.cos(raw)], axis=1)


if __name__ == "__main__":
    latent_dim = 32
    num_feats = 64                     # output last dim = 128 -> lane-dense store
    max_period_len = 256

    key = jax.random.PRNGKey(0)
    k_t, k_lat, k_w, k_t2, k_lat2 = jax.random.split(key, 5)

    batch, seq = 2, 4                  # t: [2, 4] -> M = 8
    t = jax.random.uniform(k_t, (batch, seq), jnp.float32) * max_period_len
    latent = jax.random.normal(k_lat, (batch * seq, latent_dim), jnp.float32)
    weight = jax.random.normal(k_w, (num_feats * 2, latent_dim), jnp.float32)

    ref = _reference(t, latent, weight, max_period_len=max_period_len)

    # ---- Test 1: strict f32 matmul path ----
    out = predictable_time_encoder(t, latent, weight, max_period_len=max_period_len,
                                   matmul_dtype=jnp.float32)
    out = jax.block_until_ready(out)
    assert out.shape == (batch * seq, num_feats * 2)
    assert jnp.allclose(out, ref, atol=1e-4, rtol=1e-4), "f32 mismatch vs reference"

    # ---- Test 2: default bf16 matmul inputs (f32 accumulation + f32 output) ----
    out_bf = jax.block_until_ready(
        predictable_time_encoder(t, latent, weight, max_period_len=max_period_len))
    assert jnp.allclose(out_bf, ref, atol=1e-1), "bf16-matmul mismatch vs reference"

    # ---- Test 3: bf16 output stream (halves dominant HBM write traffic) ----
    out_bo = jax.block_until_ready(
        predictable_time_encoder(t, latent, weight, max_period_len=max_period_len,
                                 matmul_dtype=jnp.float32, out_dtype=jnp.bfloat16))
    assert out_bo.dtype == jnp.bfloat16
    assert jnp.allclose(out_bo.astype(jnp.float32), ref, atol=2e-2), \
        "bf16-output mismatch vs reference"

    # ---- Test 4: ragged M, multi-step grid with a partial (masked) final block ----
    batch2, seq2 = 3, 5                # M = 15, tile_m = 8 -> grid=(2,), last block partial
    t2 = jax.random.uniform(k_t2, (batch2, seq2), jnp.float32) * max_period_len
    latent2 = jax.random.normal(k_lat2, (batch2 * seq2, latent_dim), jnp.float32)
    out2 = jax.block_until_ready(
        predictable_time_encoder(t2, latent2, weight, max_period_len=max_period_len,
                                 matmul_dtype=jnp.float32, tile_m=8))
    ref2 = _reference(t2, latent2, weight, max_period_len=max_period_len)
    assert out2.shape == (batch2 * seq2, num_feats * 2)
    assert jnp.allclose(out2, ref2, atol=1e-4, rtol=1e-4), "ragged mismatch vs reference"

    print("KERNEL_OK")
</pallas_src>

<mosaic_0001>
module attributes {stable_mosaic.version = 11 : i64} {
  func.func @_time_encoder_kernel(%arg0: i32, %arg1: memref<8x1xf32, #tpu.memory_space<vmem>>, %arg2: memref<8x32xf32, #tpu.memory_space<vmem>>, %arg3: memref<32x128xf32, #tpu.memory_space<vmem>>, %arg4: memref<32x128xf32, #tpu.memory_space<vmem>>, %arg5: memref<1x128xf32, #tpu.memory_space<vmem>>, %arg6: memref<8x128xf32, #tpu.memory_space<vmem>>) attributes {dimension_semantics = [#tpu.dimension_semantics<parallel>], iteration_bounds = array<i64: 1>, scalar_prefetch = 0 : i64, scratch_operands = 0 : i64, tpu.core_type = #tpu.core_type<tc>, window_params = [{transform_indices = @transform_0, window_bounds = array<i64: 8, 1>}, {transform_indices = @transform_1, window_bounds = array<i64: 8, 32>}, {pipeline_mode = #tpu.pipeline_mode<synchronous>, transform_indices = @transform_2, window_bounds = array<i64: 32, 128>}, {pipeline_mode = #tpu.pipeline_mode<synchronous>, transform_indices = @transform_3, window_bounds = array<i64: 32, 128>}, {pipeline_mode = #tpu.pipeline_mode<synchronous>, transform_indices = @transform_4, window_bounds = array<i64: 1, 128>}, {transform_indices = @transform_5, window_bounds = array<i64: 8, 128>}]} {
    %c0 = arith.constant 0 : index
    %c0_0 = arith.constant 0 : index
    %0 = vector.load %arg2[%c0, %c0_0] : memref<8x32xf32, #tpu.memory_space<vmem>>, vector<8x32xf32>
    %c0_1 = arith.constant 0 : index
    %c0_2 = arith.constant 0 : index
    %1 = vector.load %arg3[%c0_1, %c0_2] : memref<32x128xf32, #tpu.memory_space<vmem>>, vector<32x128xf32>
    %cst = arith.constant dense<0.000000e+00> : vector<8x128xf32>
    %2 = tpu.matmul %0, %1, %cst {dimension_numbers = #tpu.dot_dimension_numbers<[1], [0], [0], [1], [0, 0, 1, 1], [], []>} : vector<8x32xf32>, vector<32x128xf32>, vector<8x128xf32> -> vector<8x128xf32>
    %c0_3 = arith.constant 0 : index
    %c0_4 = arith.constant 0 : index
    %3 = vector.load %arg4[%c0_3, %c0_4] : memref<32x128xf32, #tpu.memory_space<vmem>>, vector<32x128xf32>
    %cst_5 = arith.constant dense<0.000000e+00> : vector<8x128xf32>
    %4 = tpu.matmul %0, %3, %cst_5 {dimension_numbers = #tpu.dot_dimension_numbers<[1], [0], [0], [1], [0, 0, 1, 1], [], []>} : vector<8x32xf32>, vector<32x128xf32>, vector<8x128xf32> -> vector<8x128xf32>
    %c0_6 = arith.constant 0 : index
    %c0_7 = arith.constant 0 : index
    %5 = vector.load %arg1[%c0_6, %c0_7] : memref<8x1xf32, #tpu.memory_space<vmem>>, vector<8x1xf32>
    %6 = vector.broadcast %5 : vector<8x1xf32> to vector<8x128xf32>
    %7 = arith.mulf %2, %6 : vector<8x128xf32>
    %8 = arith.addf %7, %4 : vector<8x128xf32>
    %c0_8 = arith.constant 0 : index
    %c0_9 = arith.constant 0 : index
    %9 = vector.load %arg5[%c0_8, %c0_9] : memref<1x128xf32, #tpu.memory_space<vmem>>, vector<1x128xf32>
    %10 = vector.broadcast %9 : vector<1x128xf32> to vector<8x128xf32>
    %11 = arith.addf %8, %10 : vector<8x128xf32>
    %12 = math.sin %11 : vector<8x128xf32>
    %c0_10 = arith.constant 0 : index
    %c0_11 = arith.constant 0 : index
    %13 = vector.load %arg6[%c0_10, %c0_11] : memref<8x128xf32, #tpu.memory_space<vmem>>, vector<8x128xf32>
    tpu.vector_store %arg6[%c0_10, %c0_11], %12 {strides = array<i32>} : memref<8x128xf32, #tpu.memory_space<vmem>>, vector<8x128xf32>,
    return
  }
  func.func @transform_0(%arg0: i32) -> (i32, i32) {
    %c0_i32 = arith.constant 0 : i32
    %c0_i32_0 = arith.constant 0 : i32
    return %arg0, %c0_i32 : i32, i32
  }
  func.func @transform_1(%arg0: i32) -> (i32, i32) {
    %c0_i32 = arith.constant 0 : i32
    %c0_i32_0 = arith.constant 0 : i32
    return %arg0, %c0_i32 : i32, i32
  }
  func.func @transform_2(%arg0: i32) -> (i32, i32) {
    %c0_i32 = arith.constant 0 : i32
    %c0_i32_0 = arith.constant 0 : i32
    %c0_i32_1 = arith.constant 0 : i32
    return %c0_i32, %c0_i32_0 : i32, i32
  }
  func.func @transform_3(%arg0: i32) -> (i32, i32) {
    %c0_i32 = arith.constant 0 : i32
    %c0_i32_0 = arith.constant 0 : i32
    %c0_i32_1 = arith.constant 0 : i32
    return %c0_i32, %c0_i32_0 : i32, i32
  }
  func.func @transform_4(%arg0: i32) -> (i32, i32) {
    %c0_i32 = arith.constant 0 : i32
    %c0_i32_0 = arith.constant 0 : i32
    %c0_i32_1 = arith.constant 0 : i32
    return %c0_i32, %c0_i32_0 : i32, i32
  }
  func.func @transform_5(%arg0: i32) -> (i32, i32) {
    %c0_i32 = arith.constant 0 : i32
    %c0_i32_0 = arith.constant 0 : i32
    return %arg0, %c0_i32 : i32, i32
  }
}

</mosaic_0001>

<llo_original>
// kernel: tpu_custom_call.1
$region0: #{tpu_custom_call.1}
  #allocation0 [shape = 'u32[]', space=smem, size = 0x4, offset = 0x4, fixed_abs, tag = 'smem constant byte address 0x4 - core index']
  #allocation1 [shape = 'u32[144,128]{1,0:T(1,128)}', space=vmem, size = 0x12000, scoped, tag = 'internal scratch']
  %s0 = inlined_call_operand.vmem [shape: f32[8,1], index: 0, kind: input, shape index: {}]
  %s1 = inlined_call_operand.vmem [shape: f32[8,32], index: 1, kind: input, shape index: {}]
  %s2 = inlined_call_operand.hbm [shape: f32[32,128], index: 2, kind: input, shape index: {}]
  %s3 = inlined_call_operand.hbm [shape: f32[32,128], index: 3, kind: input, shape index: {}]
  %s4 = inlined_call_operand.vmem [shape: f32[1,128], index: 4, kind: input, shape index: {}]
  %s5 = inlined_call_operand.hbm [shape: f32[8,128], index: 5, kind: output, shape index: {}]
  %s6 = sld [smem:[#allocation0]]
  $region38: #{tpu_custom_call.1} parent=0
    _
  %s8 = ssub.s32 1, %s6
  %s9 = scalar_select 0, %s8, %s6
  $region1: #{tpu_custom_call.1} parent=0
    #allocation2 [shape = 'u8[16384]{0}', space=vmem, size = 0x4000, scoped, tag = 'input window, operand 2, single buffered']
    #allocation3 [shape = 's32[1]{0}', space=sflag, size = 0x4, scoped, tag = 'scoped memory for tpu_custom_call.1']
    #allocation4 [shape = 's32[1]{0}', space=sflag, size = 0x4, scoped, tag = 'scoped memory for tpu_custom_call.1']
    #allocation5 [shape = 'u8[16384]{0}', space=vmem, size = 0x4000, scoped, tag = 'input window, operand 3, single buffered']
    #allocation6 [shape = 's32[1]{0}', space=sflag, size = 0x4, scoped, tag = 'scoped memory for tpu_custom_call.1']
    #allocation7 [shape = 'u8[4096]{0}', space=vmem, size = 0x1000, scoped, tag = 'output window, operand 0, single buffered']
    %10 = vsyncpa [#allocation3], 0
    %11 = vsyncpa [#allocation6], 0
    %12 = vsyncpa [#allocation4], 0
    // Predicated region
    $region2: #{tpu_custom_call.1} parent=1 // pred_check
      _
    $region3: #{tpu_custom_call.1} parent=1 // pred_check_branch
      %14 = sbr.rel (0) target = $region5
    $region4: #{tpu_custom_call.1} parent=1 // pred_region
      _
    $region5: #{tpu_custom_call.1} parent=1 // pred_fallthru
      _
    // Predicated region
    $region6: #{tpu_custom_call.1} parent=1 // pred_check
      _
    $region7: #{tpu_custom_call.1} parent=1 // pred_check_branch
      %16 = sbr.rel (0) target = $region9
    $region8: #{tpu_custom_call.1} parent=1 // pred_region
      _
    $region9: #{tpu_custom_call.1} parent=1 // pred_fallthru
      _
    // Predicated region
    $region10: #{tpu_custom_call.1} parent=1 // pred_check
      _
    $region11: #{tpu_custom_call.1} parent=1 // pred_check_branch
      %18 = sbr.rel (0) target = $region13
    $region12: #{tpu_custom_call.1} parent=1 // pred_region
      %s20 = ssub.s32 512, 512
      %21 = vsyncadd [#allocation3], %s20
      %s22 = sshll.u32 [#allocation2], 4
      %s23 = int_to_ptr.vmem [resolvable:$true] %s22
      %28 = dma.hbm_to_vmem [thread:$0]  %s2, 512, %s23, [#allocation3], 128, 128, 8
    $region13: #{tpu_custom_call.1} parent=1 // pred_fallthru
      _
    // Predicated region
    $region14: #{tpu_custom_call.1} parent=1 // pred_check
      _
    $region15: #{tpu_custom_call.1} parent=1 // pred_check_branch
      %30 = sbr.rel (0) target = $region17
    $region16: #{tpu_custom_call.1} parent=1 // pred_region
      %s32 = ssub.s32 512, 512
      %33 = vsyncadd [#allocation6], %s32
      %s34 = sshll.u32 [#allocation5], 4
      %s35 = int_to_ptr.vmem [resolvable:$true] %s34
      %40 = dma.hbm_to_vmem [thread:$0]  %s3, 512, %s35, [#allocation6], 128, 128, 8
    $region17: #{tpu_custom_call.1} parent=1 // pred_fallthru
      _
    // Predicated region
    $region18: #{tpu_custom_call.1} parent=1 // pred_check
      _
    $region19: #{tpu_custom_call.1} parent=1 // pred_check_branch
      %42 = sbr.rel (0) target = $region21
    $region20: #{tpu_custom_call.1} parent=1 // pred_region
      _
    $region21: #{tpu_custom_call.1} parent=1 // pred_fallthru
      _
    // Predicated region
    $region22: #{tpu_custom_call.1} parent=1 // pred_check
      _
    $region23: #{tpu_custom_call.1} parent=1 // pred_check_branch
      %44 = sbr.rel (0) target = $region25
    $region24: #{tpu_custom_call.1} parent=1 // pred_region
      %45 = dma.done [#allocation3], 512
    $region25: #{tpu_custom_call.1} parent=1 // pred_fallthru
      _
    // Predicated region
    $region26: #{tpu_custom_call.1} parent=1 // pred_check
      _
    $region27: #{tpu_custom_call.1} parent=1 // pred_check_branch
      %47 = sbr.rel (0) target = $region29
    $region28: #{tpu_custom_call.1} parent=1 // pred_region
      %48 = dma.done [#allocation6], 512
    $region29: #{tpu_custom_call.1} parent=1 // pred_fallthru
      _
    %v49 = vld [vmem:[%s1] sm:$0xff]
    %v50 = vld [vmem:[#allocation2] sm:$0xff]
    %v51 = vld [vmem:[#allocation2 + $0x8] sm:$0xff]
    %v52 = vld [vmem:[#allocation2 + $0x10] sm:$0xff]
    %v53 = vld [vmem:[#allocation2 + $0x18] sm:$0xff]
    %vm54 = vcmask 261120
    %v56 = vsel %vm54, %v49, 0
    %58 = vmatprep.subr.mxu0 0.0
    %59 = vmatpush1.msra.mxu0 %v50
    %60 = vmatprep.subr.mxu0 0.0
    %61 = vmatpush1.msra.mxu0 %v51
    %62 = vmatprep.subr.mxu0 0.0
    %63 = vmatpush1.msra.mxu0 %v52
    %64 = vmatprep.subr.mxu0 0.0
    %65 = vmatpush1.msra.mxu0 %v53
    %66 = vmatprep.subr.mxu0 0.0
    %67 = vmatpush1.msra.mxu0 0.0
    %68 = vmatprep.subr.mxu0 0.0
    %69 = vmatpush1.msra.mxu0 0.0
    %70 = vmatprep.subr.mxu0 0.0
    %71 = vmatpush1.msra.mxu0 0.0
    %72 = vmatprep.subr.mxu0 0.0
    %73 = vmatpush1.msra.mxu0 0.0
    %74 = vmatprep.subr.mxu0 0.0
    %75 = vmatpush1.msra.mxu0 0.0
    %76 = vmatprep.subr.mxu0 0.0
    %77 = vmatpush1.msra.mxu0 0.0
    %78 = vmatprep.subr.mxu0 0.0
    %79 = vmatpush1.msra.mxu0 0.0
    %80 = vmatprep.subr.mxu0 0.0
    %81 = vmatpush1.msra.mxu0 0.0
    %82 = vmatprep.subr.mxu0 0.0
    %83 = vmatpush1.msra.mxu0 0.0
    %84 = vmatprep.subr.mxu0 0.0
    %85 = vmatpush1.msra.mxu0 0.0
    %86 = vmatprep.subr.mxu0 0.0
    %87 = vmatpush1.msra.mxu0 0.0
    %88 = vmatprep.subr.mxu0 0.0
    %89 = vmatpush1.msra.mxu0 0.0
    %90 = vmatprep.subr.mxu0 0.0
    %91 = vmatpush1.msra.mxu0 0.0
    %92 = vmatprep.subr.mxu0 0.0
    %93 = vmatpush1.msra.mxu0 0.0
    %94 = vmatprep.subr.mxu0 0.0
    %95 = vmatpush1.msra.mxu0 0.0
    %96 = vmatprep.subr.mxu0 0.0
    %97 = vmatpush1.msra.mxu0 0.0
    %98 = vmatprep.subr.mxu0 0.0
    %99 = vmatpush1.msra.mxu0 0.0
    %100 = vmatprep.subr.mxu0 0.0
    %101 = vmatpush1.msra.mxu0 0.0
    %102 = vmatprep.subr.mxu0 0.0
    %103 = vmatpush1.msra.mxu0 0.0
    %104 = vmatprep.subr.mxu0 0.0
    %105 = vmatpush1.msra.mxu0 0.0
    %106 = vmatprep.subr.mxu0 0.0
    %107 = vmatpush1.msra.mxu0 0.0
    %108 = vmatprep.subr.mxu0 0.0
    %109 = vmatpush1.msra.mxu0 0.0
    %110 = vmatprep.subr.mxu0 0.0
    %111 = vmatpush1.msra.mxu0 0.0
    %112 = vmatprep.subr.mxu0 0.0
    %113 = vmatpush1.msra.mxu0 0.0
    %114 = vmatprep.subr.mxu0 0.0
    %115 = vmatpush1.msra.mxu0 0.0
    %116 = vmatprep.subr.mxu0 0.0
    %117 = vmatpush1.msra.mxu0 0.0
    %118 = vmatprep.subr.mxu0 0.0
    %119 = vmatpush1.msra.mxu0 0.0
    %120 = vmatprep.subr.mxu0 0.0
    %121 = vmatpush1.msra.mxu0 0.0
    %122 = vmatprep.mubr.f32.mxu0 0.0
    %123 = vmatmul.mubr.f32.gmra.mrb[0].mxu0 %v56
    %v124 = vpop.f32.mrb[0].mxu0
    %v125 = vadd.f32 0.0, %v124
    %v126 = vpop.f32.mrb[0].mxu0
    %127 = vdwg.mxu0
    %v128 = vld [vmem:[#allocation5] sm:$0xff]
    %v129 = vld [vmem:[#allocation5 + $0x8] sm:$0xff]
    %v130 = vld [vmem:[#allocation5 + $0x10] sm:$0xff]
    %v131 = vld [vmem:[#allocation5 + $0x18] sm:$0xff]
    %132 = vmatprep.subr.mxu0 0.0
    %133 = vmatpush1.msra.mxu0 %v128
    %134 = vmatprep.subr.mxu0 0.0
    %135 = vmatpush1.msra.mxu0 %v129
    %136 = vmatprep.subr.mxu0 0.0
    %137 = vmatpush1.msra.mxu0 %v130
    %138 = vmatprep.subr.mxu0 0.0
    %139 = vmatpush1.msra.mxu0 %v131
    %140 = vmatprep.subr.mxu0 0.0
    %141 = vmatpush1.msra.mxu0 0.0
    %142 = vmatprep.subr.mxu0 0.0
    %143 = vmatpush1.msra.mxu0 0.0
    %144 = vmatprep.subr.mxu0 0.0
    %145 = vmatpush1.msra.mxu0 0.0
    %146 = vmatprep.subr.mxu0 0.0
    %147 = vmatpush1.msra.mxu0 0.0
    %148 = vmatprep.subr.mxu0 0.0
    %149 = vmatpush1.msra.mxu0 0.0
    %150 = vmatprep.subr.mxu0 0.0
    %151 = vmatpush1.msra.mxu0 0.0
    %152 = vmatprep.subr.mxu0 0.0
    %153 = vmatpush1.msra.mxu0 0.0
    %154 = vmatprep.subr.mxu0 0.0
    %155 = vmatpush1.msra.mxu0 0.0
    %156 = vmatprep.subr.mxu0 0.0
    %157 = vmatpush1.msra.mxu0 0.0
    %158 = vmatprep.subr.mxu0 0.0
    %159 = vmatpush1.msra.mxu0 0.0
    %160 = vmatprep.subr.mxu0 0.0
    %161 = vmatpush1.msra.mxu0 0.0
    %162 = vmatprep.subr.mxu0 0.0
    %163 = vmatpush1.msra.mxu0 0.0
    %164 = vmatprep.subr.mxu0 0.0
    %165 = vmatpush1.msra.mxu0 0.0
    %166 = vmatprep.subr.mxu0 0.0
    %167 = vmatpush1.msra.mxu0 0.0
    %168 = vmatprep.subr.mxu0 0.0
    %169 = vmatpush1.msra.mxu0 0.0
    %170 = vmatprep.subr.mxu0 0.0
    %171 = vmatpush1.msra.mxu0 0.0
    %172 = vmatprep.subr.mxu0 0.0
    %173 = vmatpush1.msra.mxu0 0.0
    %174 = vmatprep.subr.mxu0 0.0
    %175 = vmatpush1.msra.mxu0 0.0
    %176 = vmatprep.subr.mxu0 0.0
    %177 = vmatpush1.msra.mxu0 0.0
    %178 = vmatprep.subr.mxu0 0.0
    %179 = vmatpush1.msra.mxu0 0.0
    %180 = vmatprep.subr.mxu0 0.0
    %181 = vmatpush1.msra.mxu0 0.0
    %182 = vmatprep.subr.mxu0 0.0
    %183 = vmatpush1.msra.mxu0 0.0
    %184 = vmatprep.subr.mxu0 0.0
    %185 = vmatpush1.msra.mxu0 0.0
    %186 = vmatprep.subr.mxu0 0.0
    %187 = vmatpush1.msra.mxu0 0.0
    %188 = vmatprep.subr.mxu0 0.0
    %189 = vmatpush1.msra.mxu0 0.0
    %190 = vmatprep.subr.mxu0 0.0
    %191 = vmatpush1.msra.mxu0 0.0
    %192 = vmatprep.subr.mxu0 0.0
    %193 = vmatpush1.msra.mxu0 0.0
    %194 = vmatprep.subr.mxu0 0.0
    %195 = vmatpush1.msra.mxu0 0.0
    %196 = vmatprep.mubr.f32.mxu0 0.0
    %197 = vmatmul.mubr.f32.gmra.mrb[0].mxu0 %v56
    %v198 = vpop.f32.mrb[0].mxu0
    %v199 = vadd.f32 0.0, %v198
    %v200 = vpop.f32.mrb[0].mxu0
    %201 = vdwg.mxu0
    %v202 = vld [vmem:[%s0] sm:$0xff]
    %204 = vset.pattern.permute.xlu0 0
    %205 = vperm.xlu0 %204, %v202
    %v206 = vpop.permute.xlu0 %205
    %v208 = vmul.f32 %v125, %v206
    %v209 = vadd.f32 %v208, %v199
    %v210 = vld [vmem:[%s4] sm:$0x1]
    %v212 = vlaneseq
    %v213 = vshrl.u32 %v212, 7
    %v214 = vsub.s32 0, %v213
    %v215 = vrot.slane %v210, %v214
    %v217 = vadd.f32 %v209, %v215
    %v218 = vand.u32 2147483647, %v217
    %vm219 = vcmp.le.f32.partialorder %v218, 0.7853982
    %vm220 = vcmp.lt.s32.totalorder %v217, 0
    %v221 = vand.u32 %v217, 2139095040
    %v222 = vshrl.u32 %v221, 23
    %v223 = vsub.s32 %v222, 127
    %v224 = vand.u32 2147483647, %v217
    %v225 = vand.u32 %v224, 8388607
    %v226 = vor.u32 %v225, 8388608
    %v227 = vsub.s32 0, %v226
    %v228 = vadd.s32 %v223, 1
    %vm229 = vcmp.gt.s32.totalorder %v228, 0
    %v230 = vsel %vm229, %v228, 0
    %v231 = vshrl.u32 %v230, 5
    %v232 = vand.u32 %v230, 31
    %v233 = vsub.s32 32, %v232
    %v234 = vshrl.u32 683565275, %v233
    %v235 = vshll.u32 683565275, %v232
    %v236 = vshrl.u32 2475754826, %v233
    %v237 = vor.u32 %v235, %v236
    %v238 = vshll.u32 2475754826, %v232
    %v239 = vshrl.u32 2131351028, %v233
    %v240 = vor.u32 %v238, %v239
    %v241 = vshll.u32 2131351028, %v232
    %v242 = vshrl.u32 2102212464, %v233
    %v243 = vor.u32 %v241, %v242
    %v244 = vshll.u32 2102212464, %v232
    %v245 = vshrl.u32 920167782, %v233
    %v246 = vor.u32 %v244, %v245
    %v247 = vshll.u32 920167782, %v232
    %v248 = vshrl.u32 1326507024, %v233
    %v249 = vor.u32 %v247, %v248
    %vm250 = vcmp.lt.s32.totalorder %v231, 1
    %vm251 = vcmp.lt.s32.totalorder %v231, 2
    %vm252 = vcmp.lt.s32.totalorder %v231, 3
    %vm253 = vcmp.lt.s32.totalorder %v231, 4
    %v254 = vsel %vm250, %v234, %v237
    %v255 = vsel %vm253, %v243, 2102212464
    %v256 = vsel %vm252, %v240, %v255
    %v257 = vsel %vm251, %v254, %v256
    %v258 = vsel %vm250, %v237, %v240
    %v259 = vsel %vm253, %v246, 920167782
    %v260 = vsel %vm252, %v243, %v259
    %v261 = vsel %vm251, %v258, %v260
    %v262 = vsel %vm250, %v240, %v243
    %v263 = vsel %vm253, %v249, 1326507024
    %v264 = vsel %vm252, %v246, %v263
    %v265 = vsel %vm251, %v262, %v264
    %v266 = vshll.u32 %v226, 8
    %v267 = vmul.u32.u64.compose %v266, %v265
    %v268 = vextract.low.u32 %v267
    %v269 = vextract.high.u32 %v267
    %v270 = vmul.u32.u64.compose %v266, %v261
    %v271 = vextract.low.u32 %v270
    %v272 = vextract.high.u32 %v270
    %v273 = vmul.u32 %v266, %v257
    %v274 = vadd.s32 %v269, %v271
    %vm275 = vc.u32 %v269, %v271
    %v276 = vadd.s32 %v272, 1
    %v277 = vsel %vm275, %v276, %v272
    %v278 = vadd.s32 %v273, %v277
    %v279 = vadd.s32 %v278, 536870912
    %v280 = vshrl.u32 %v279, 30
    %v281 = vshll.u32 %v280, 30
    %v282 = vsub.s32 %v278, %v281
    %vm283 = vcmp.lt.s32.totalorder %v282, 0
    %v284 = vsub.s32 0, %v282
    %v285 = vsel %vm283, %v284, %v282
    %v286 = vclz %v285
    %v287 = vsub.s32 %v286, 2
    %vm288 = vcmp.gt.s32.totalorder 0, %v287
    %v289 = vsel %vm288, 0, %v287
    %v290 = vsub.s32 32, %v289
    %v291 = vshll.u32 %v282, %v289
    %v292 = vshrl.u32 %v274, %v290
    %v293 = vor.u32 %v291, %v292
    %v294 = vsub.s32 4294967266, %v289
    %v295 = vadd.s32 %v294, 127
    %v296 = vshll.u32 %v295, 23
    %v297 = vor.u32 4788187, %v296
    %v298 = vand.u32 2147483647, %v297
    %v300 = vcvt.s32.f32 %v293
    %v301 = vmul.f32 %v300, %v298
    %v302 = vxor.u32 %v301, 2147483648
    %v303 = vsel %vm220, %v302, %v301
    %v304 = vsub.s32 4, %v280
    %v305 = vsel %vm220, %v304, %v280
    %v306 = vsel %vm219, %v217, %v303
    %v307 = vsel %vm219, 0, %v305
    %v308 = vcosq.f32.pop %v306
    %v309 = vsinq.f32.pop %v306
    %vm310 = vweird.f32 %v217
    %v311 = vadd.s32 %v307, 3
    %v312 = vand.u32 %v311, 3
    %vm313 = vcmp.lt.s32.totalorder %v312, 2
    %vm314 = vcmp.eq.s32.totalorder %v312, 0
    %v315 = vxor.u32 %v309, 2147483648
    %v316 = vsel %vm314, %v308, %v315
    %vm317 = vcmp.eq.s32.totalorder %v312, 2
    %v318 = vxor.u32 %v308, 2147483648
    %v319 = vsel %vm317, %v318, %v309
    %v320 = vsel %vm313, %v316, %v319
    %v321 = vsel %vm310, nan, %v320
    %322 = vst [vmem:[#allocation7] sm:$0xff] %v321
    // Predicated region
    $region30: #{tpu_custom_call.1} parent=1 // pred_check
      _
    $region31: #{tpu_custom_call.1} parent=1 // pred_check_branch
      %324 = sbr.rel (0) target = $region33
    $region32: #{tpu_custom_call.1} parent=1 // pred_region
      %s326 = ssub.s32 128, 128
      %327 = vsyncadd [#allocation4], %s326
      %s329 = sshll.u32 [#allocation7], 4
      %s330 = int_to_ptr.vmem [resolvable:$true] %s329
      %332 = dma.vmem_to_hbm [thread:$0]  %s330, 128, %s5, [#allocation4]
    $region33: #{tpu_custom_call.1} parent=1 // pred_fallthru
      _
    // Predicated region
    $region34: #{tpu_custom_call.1} parent=1 // pred_check
      _
    $region35: #{tpu_custom_call.1} parent=1 // pred_check_branch
      %334 = sbr.rel (0) target = $region37
    $region36: #{tpu_custom_call.1} parent=1 // pred_region
      %335 = dma.done [#allocation4], 128
    $region37: #{tpu_custom_call.1} parent=1 // pred_fallthru
      _
    %336 = vsyncpa [#allocation3], 1
    %337 = vsyncpa [#allocation6], 1
    %338 = vsyncpa [#allocation4], 1

</llo_original>
